<compile_context>
chip_gen: v6e
topology: v6e:2x2x1
jax: 0.10.0
libtpu: 0.0.40
codegen_flags: <defaults>
</compile_context>

<pallas_src>
import jax
import jax.numpy as jnp
from jax.experimental import pallas as pl
from jax.experimental.pallas import tpu as pltpu


def _joint_mapper_kernel(sel_ref, joints_ref, out_ref):
    # sel_ref:    (J*D, Npad)  0/1 selector, constant across grid steps
    # joints_ref: (TB,  J*D)   batch tile, contiguous flatten of (TB, J, D)
    # out_ref:    (TB,  Npad)  lane-dense gathered output tile
    x = joints_ref[...]
    if x.dtype != sel_ref.dtype:
        x = x.astype(sel_ref.dtype)          # exact widen (e.g. f16 -> f32)
    out_ref[...] = jnp.dot(
        x, sel_ref[...], preferred_element_type=jnp.float32
    ).astype(out_ref.dtype)


def joint_mapper(joints, joint_maps=None):
    """Pallas equivalent of JointMapper.forward."""
    if joint_maps is None:
        return joints

    B, J, D = joints.shape
    K = int(joint_maps.shape[0])
    JD = J * D
    KD = K * D
    Npad = ((KD + 127) // 128) * 128          # 128-aligned output lane width

    # MXU operand dtype: bf16 stays bf16 (native fast path), everything else f32.
    sel_dtype = jnp.bfloat16 if joints.dtype == jnp.bfloat16 else jnp.float32

    # Build the (JD, Npad) 0/1 selector once in the wrapper (tiny array).
    # Column n (= k*D + d) selects flattened row jm[k]*D + d; padded columns get
    # target -1 so they never match -> zero columns.
    jm = joint_maps.astype(jnp.int32)
    col = jnp.arange(Npad, dtype=jnp.int32)
    k_idx = jnp.minimum(col // D, K - 1)
    d_idx = col % D
    target_jd = jnp.where(col < KD, jnp.take(jm, k_idx) * D + d_idx, -1)
    row = jnp.arange(JD, dtype=jnp.int32)
    sel = (row[:, None] == target_jd[None, :]).astype(sel_dtype)   # (JD, Npad)

    joints_flat = joints.reshape(B, JD)       # contiguous reshape, no copy

    # Batch tile: full B for small batches (full-dim exemption), else 512 rows
    # (multiple of 8; ~5 MiB/step of double-buffered VMEM at SMPL sizes, fits
    # v7x's 64 MiB per-TC VMEM with headroom and v5e's 16 MiB default scope).
    TB = B if B <= 512 else 512
    grid = (pl.cdiv(B, TB),)

    itemsize = joints.dtype.itemsize
    cost = pl.CostEstimate(
        flops=2 * B * JD * Npad,
        transcendentals=0,
        bytes_accessed=(B * JD * itemsize            # joints in
                        + B * Npad * itemsize        # gathered out
                        + JD * Npad * jnp.dtype(sel_dtype).itemsize),  # selector
    )

    out_flat = pl.pallas_call(
        _joint_mapper_kernel,
        out_shape=jax.ShapeDtypeStruct((B, Npad), joints.dtype),
        grid_spec=pltpu.PrefetchScalarGridSpec(
            num_scalar_prefetch=0,
            grid=grid,
            in_specs=[
                # Selector: constant block index -> fetched once per core.
                pl.BlockSpec((JD, Npad), lambda b: (0, 0)),
                # Batch tiles stream through the pipeline.
                pl.BlockSpec((TB, JD), lambda b: (b, 0)),
            ],
            out_specs=pl.BlockSpec((TB, Npad), lambda b: (b, 0)),
        ),
        compiler_params=pltpu.CompilerParams(
            dimension_semantics=("parallel",)),   # shards batch tiles across TCs on v7x
        cost_estimate=cost,
    )(sel, joints_flat)

    # Drop the 128-alignment padding, then the reshape back to (B, K, D) is free.
    return out_flat[:, :KD].reshape(B, K, D)


if __name__ == "__main__":
    key = jax.random.PRNGKey(0)

    B, J, D = 2, 16, 3            # batch, num input joints, xyz
    K = 8                         # number of mapped (output) joints

    joints = jax.random.normal(key, (B, J, D), dtype=jnp.float32)
    # Deterministic joint map (indices into axis 1, repeats allowed).
    joint_maps = jnp.array([5, 0, 3, 15, 7, 2, 2, 9], dtype=jnp.int32)

    # f32 path
    out = jax.block_until_ready(joint_mapper(joints, joint_maps))
    ref = jnp.take(joints, joint_maps, axis=1)   # == torch.index_select(., 1, .)
    assert out.shape == (B, K, D), out.shape
    assert out.dtype == joints.dtype
    assert jnp.allclose(out, ref, atol=1e-6), "mismatch vs reference gather (f32)"

    # bf16 path (bf16 MXU operands, still an exact gather)
    joints_bf16 = joints.astype(jnp.bfloat16)
    out_bf16 = jax.block_until_ready(joint_mapper(joints_bf16, joint_maps))
    ref_bf16 = jnp.take(joints_bf16, joint_maps, axis=1)
    assert out_bf16.shape == (B, K, D)
    assert out_bf16.dtype == jnp.bfloat16
    assert jnp.array_equal(out_bf16, ref_bf16), "mismatch vs reference gather (bf16)"

    # Larger / ragged batch to exercise the tiled, pipelined path.
    B2 = 20
    joints2 = jax.random.normal(jax.random.PRNGKey(1), (B2, J, D), dtype=jnp.float32)
    out2 = jax.block_until_ready(joint_mapper(joints2, joint_maps))
    ref2 = jnp.take(joints2, joint_maps, axis=1)
    assert jnp.allclose(out2, ref2, atol=1e-6), "mismatch vs reference gather (B=20)"

    # joint_maps=None path (identity).
    assert joint_mapper(joints, None) is joints

    print("KERNEL_OK")
</pallas_src>

<mosaic_0001>
module attributes {stable_mosaic.version = 11 : i64} {
  func.func @_joint_mapper_kernel(%arg0: i32, %arg1: memref<48x128xf32, #tpu.memory_space<vmem>>, %arg2: memref<2x48xf32, #tpu.memory_space<vmem>>, %arg3: memref<2x128xf32, #tpu.memory_space<vmem>>) attributes {dimension_semantics = [#tpu.dimension_semantics<parallel>], iteration_bounds = array<i64: 1>, scalar_prefetch = 0 : i64, scratch_operands = 0 : i64, tpu.core_type = #tpu.core_type<tc>, window_params = [{pipeline_mode = #tpu.pipeline_mode<synchronous>, transform_indices = @transform_0, window_bounds = array<i64: 48, 128>}, {transform_indices = @transform_1, window_bounds = array<i64: 2, 48>}, {transform_indices = @transform_2, window_bounds = array<i64: 2, 128>}]} {
    %c0 = arith.constant 0 : index
    %c0_0 = arith.constant 0 : index
    %0 = vector.load %arg2[%c0, %c0_0] : memref<2x48xf32, #tpu.memory_space<vmem>>, vector<2x48xf32>
    %c0_1 = arith.constant 0 : index
    %c0_2 = arith.constant 0 : index
    %1 = vector.load %arg1[%c0_1, %c0_2] : memref<48x128xf32, #tpu.memory_space<vmem>>, vector<48x128xf32>
    %cst = arith.constant dense<0.000000e+00> : vector<2x128xf32>
    %2 = tpu.matmul %0, %1, %cst {dimension_numbers = #tpu.dot_dimension_numbers<[1], [0], [0], [1], [0, 0, 1, 1], [], []>} : vector<2x48xf32>, vector<48x128xf32>, vector<2x128xf32> -> vector<2x128xf32>
    %c0_3 = arith.constant 0 : index
    %c0_4 = arith.constant 0 : index
    %3 = vector.load %arg3[%c0_3, %c0_4] : memref<2x128xf32, #tpu.memory_space<vmem>>, vector<2x128xf32>
    tpu.vector_store %arg3[%c0_3, %c0_4], %2 {strides = array<i32>} : memref<2x128xf32, #tpu.memory_space<vmem>>, vector<2x128xf32>,
    return
  }
  func.func @transform_0(%arg0: i32) -> (i32, i32) {
    %c0_i32 = arith.constant 0 : i32
    %c0_i32_0 = arith.constant 0 : i32
    %c0_i32_1 = arith.constant 0 : i32
    return %c0_i32, %c0_i32_0 : i32, i32
  }
  func.func @transform_1(%arg0: i32) -> (i32, i32) {
    %c0_i32 = arith.constant 0 : i32
    %c0_i32_0 = arith.constant 0 : i32
    return %arg0, %c0_i32 : i32, i32
  }
  func.func @transform_2(%arg0: i32) -> (i32, i32) {
    %c0_i32 = arith.constant 0 : i32
    %c0_i32_0 = arith.constant 0 : i32
    return %arg0, %c0_i32 : i32, i32
  }
}

</mosaic_0001>

<llo_original>
// kernel: tpu_custom_call.1
$region0: #{tpu_custom_call.1}
  #allocation0 [shape = 'u32[]', space=smem, size = 0x4, offset = 0x4, fixed_abs, tag = 'smem constant byte address 0x4 - core index']
  #allocation1 [shape = 'u32[144,128]{1,0:T(1,128)}', space=vmem, size = 0x12000, scoped, tag = 'internal scratch']
  %s0 = inlined_call_operand.hbm [shape: f32[48,128], index: 0, kind: input, shape index: {}]
  %s1 = inlined_call_operand.hbm [shape: f32[2,48], index: 1, kind: input, shape index: {}]
  %s2 = inlined_call_operand.hbm [shape: f32[2,128], index: 2, kind: output, shape index: {}]
  %s3 = sld [smem:[#allocation0]]
  $region26: #{tpu_custom_call.1} parent=0
    _
  %s5 = ssub.s32 1, %s3
  %s6 = scalar_select 0, %s5, %s3
  $region1: #{tpu_custom_call.1} parent=0
    #allocation2 [shape = 'u8[24576]{0}', space=vmem, size = 0x6000, scoped, tag = 'input window, operand 0, single buffered']
    #allocation3 [shape = 's32[1]{0}', space=sflag, size = 0x4, scoped, tag = 'scoped memory for tpu_custom_call.1']
    #allocation4 [shape = 's32[1]{0}', space=sflag, size = 0x4, scoped, tag = 'scoped memory for tpu_custom_call.1']
    #allocation5 [shape = 'u8[1024]{0}', space=vmem, size = 0x400, scoped, tag = 'input window, operand 1, single buffered']
    #allocation6 [shape = 's32[1]{0}', space=sflag, size = 0x4, scoped, tag = 'scoped memory for tpu_custom_call.1']
    #allocation7 [shape = 'u8[1024]{0}', space=vmem, size = 0x400, scoped, tag = 'output window, operand 0, single buffered']
    %7 = vsyncpa [#allocation3], 0
    %8 = vsyncpa [#allocation6], 0
    %9 = vsyncpa [#allocation4], 0
    // Predicated region
    $region2: #{tpu_custom_call.1} parent=1 // pred_check
      _
    $region3: #{tpu_custom_call.1} parent=1 // pred_check_branch
      %11 = sbr.rel (0) target = $region5
    $region4: #{tpu_custom_call.1} parent=1 // pred_region
      %s13 = ssub.s32 768, 768
      %14 = vsyncadd [#allocation3], %s13
      %s15 = sshll.u32 [#allocation2], 4
      %s16 = int_to_ptr.vmem [resolvable:$true] %s15
      %21 = dma.hbm_to_vmem [thread:$0]  %s0, 768, %s16, [#allocation3], 128, 128, 8
    $region5: #{tpu_custom_call.1} parent=1 // pred_fallthru
      _
    // Predicated region
    $region6: #{tpu_custom_call.1} parent=1 // pred_check
      _
    $region7: #{tpu_custom_call.1} parent=1 // pred_check_branch
      %23 = sbr.rel (0) target = $region9
    $region8: #{tpu_custom_call.1} parent=1 // pred_region
      %s25 = ssub.s32 32, 32
      %26 = vsyncadd [#allocation6], %s25
      %s28 = sshll.u32 [#allocation5], 4
      %s29 = int_to_ptr.vmem [resolvable:$true] %s28
      %31 = dma.hbm_to_vmem [thread:$0]  %s1, 32, %s29, [#allocation6]
    $region9: #{tpu_custom_call.1} parent=1 // pred_fallthru
      _
    // Predicated region
    $region10: #{tpu_custom_call.1} parent=1 // pred_check
      _
    $region11: #{tpu_custom_call.1} parent=1 // pred_check_branch
      %33 = sbr.rel (0) target = $region13
    $region12: #{tpu_custom_call.1} parent=1 // pred_region
      %34 = dma.done [#allocation3], 768
    $region13: #{tpu_custom_call.1} parent=1 // pred_fallthru
      _
    // Predicated region
    $region14: #{tpu_custom_call.1} parent=1 // pred_check
      _
    $region15: #{tpu_custom_call.1} parent=1 // pred_check_branch
      %36 = sbr.rel (0) target = $region17
    $region16: #{tpu_custom_call.1} parent=1 // pred_region
      %37 = dma.done [#allocation6], 32
    $region17: #{tpu_custom_call.1} parent=1 // pred_fallthru
      _
    %v38 = vld [vmem:[#allocation5] sm:$0x3]
    %v39 = vld [vmem:[#allocation2] sm:$0xff]
    %v40 = vld [vmem:[#allocation2 + $0x8] sm:$0xff]
    %v41 = vld [vmem:[#allocation2 + $0x10] sm:$0xff]
    %v42 = vld [vmem:[#allocation2 + $0x18] sm:$0xff]
    %v43 = vld [vmem:[#allocation2 + $0x20] sm:$0xff]
    %v44 = vld [vmem:[#allocation2 + $0x28] sm:$0xff]
    %vm45 = vcmask 392192
    %v47 = vsel %vm45, %v38, 0
    %49 = vmatprep.subr.mxu0 0.0
    %50 = vmatpush1.msra.mxu0 0.0
    %51 = vmatprep.subr.mxu0 0.0
    %52 = vmatpush1.msra.mxu0 0.0
    %53 = vmatprep.subr.mxu0 0.0
    %54 = vmatpush1.msra.mxu0 0.0
    %55 = vmatprep.subr.mxu0 0.0
    %56 = vmatpush1.msra.mxu0 0.0
    %57 = vmatprep.subr.mxu0 0.0
    %58 = vmatpush1.msra.mxu0 0.0
    %59 = vmatprep.subr.mxu0 0.0
    %60 = vmatpush1.msra.mxu0 0.0
    %61 = vmatprep.subr.mxu0 0.0
    %62 = vmatpush1.msra.mxu0 0.0
    %63 = vmatprep.subr.mxu0 0.0
    %64 = vmatpush1.msra.mxu0 0.0
    %65 = vmatprep.subr.mxu0 0.0
    %66 = vmatpush1.msra.mxu0 0.0
    %67 = vmatprep.subr.mxu0 0.0
    %68 = vmatpush1.msra.mxu0 0.0
    %69 = vmatprep.subr.mxu0 0.0
    %70 = vmatpush1.msra.mxu0 %v44
    %71 = vmatprep.subr.mxu0 0.0
    %72 = vmatpush1.msra.mxu0 %v43
    %73 = vmatprep.subr.mxu0 0.0
    %74 = vmatpush1.msra.mxu0 %v42
    %75 = vmatprep.subr.mxu0 0.0
    %76 = vmatpush1.msra.mxu0 %v41
    %77 = vmatprep.subr.mxu0 0.0
    %78 = vmatpush1.msra.mxu0 %v40
    %79 = vmatprep.subr.mxu0 0.0
    %80 = vmatpush1.msra.mxu0 %v39
    %81 = vmatprep.subr.mxu0 0.0
    %82 = vmatpush2.msra.mxu0 0.0
    %83 = vmatprep.subr.mxu0 0.0
    %84 = vmatpush2.msra.mxu0 0.0
    %85 = vmatprep.subr.mxu0 0.0
    %86 = vmatpush2.msra.mxu0 0.0
    %87 = vmatprep.subr.mxu0 0.0
    %88 = vmatpush2.msra.mxu0 0.0
    %89 = vmatprep.subr.mxu0 0.0
    %90 = vmatpush2.msra.mxu0 0.0
    %91 = vmatprep.subr.mxu0 0.0
    %92 = vmatpush2.msra.mxu0 0.0
    %93 = vmatprep.subr.mxu0 0.0
    %94 = vmatpush2.msra.mxu0 0.0
    %95 = vmatprep.subr.mxu0 0.0
    %96 = vmatpush2.msra.mxu0 0.0
    %97 = vmatprep.subr.mxu0 0.0
    %98 = vmatpush2.msra.mxu0 0.0
    %99 = vmatprep.subr.mxu0 0.0
    %100 = vmatpush2.msra.mxu0 0.0
    %101 = vmatprep.subr.mxu0 0.0
    %102 = vmatpush2.msra.mxu0 0.0
    %103 = vmatprep.subr.mxu0 0.0
    %104 = vmatpush2.msra.mxu0 0.0
    %105 = vmatprep.subr.mxu0 0.0
    %106 = vmatpush2.msra.mxu0 0.0
    %107 = vmatprep.subr.mxu0 0.0
    %108 = vmatpush2.msra.mxu0 0.0
    %109 = vmatprep.subr.mxu0 0.0
    %110 = vmatpush2.msra.mxu0 0.0
    %111 = vmatprep.subr.mxu0 0.0
    %112 = vmatpush2.msra.mxu0 0.0
    %113 = vmatprep.mubr.f32.mxu0 0.0
    %114 = vmatmul.mubr.f32.gmra.mxu0 %v47
    %v115 = vpop.f32.mrf.mxu0
    %v116 = vadd.f32 0.0, %v115
    %v117 = vpop.f32.mrf.mxu0
    %118 = vdwg.mxu0
    %119 = vst [vmem:[#allocation7] sm:$0x3] %v116
    // Predicated region
    $region18: #{tpu_custom_call.1} parent=1 // pred_check
      _
    $region19: #{tpu_custom_call.1} parent=1 // pred_check_branch
      %121 = sbr.rel (0) target = $region21
    $region20: #{tpu_custom_call.1} parent=1 // pred_region
      %s123 = ssub.s32 32, 32
      %124 = vsyncadd [#allocation4], %s123
      %s126 = sshll.u32 [#allocation7], 4
      %s127 = int_to_ptr.vmem [resolvable:$true] %s126
      %129 = dma.vmem_to_hbm [thread:$0]  %s127, 32, %s2, [#allocation4]
    $region21: #{tpu_custom_call.1} parent=1 // pred_fallthru
      _
    // Predicated region
    $region22: #{tpu_custom_call.1} parent=1 // pred_check
      _
    $region23: #{tpu_custom_call.1} parent=1 // pred_check_branch
      %131 = sbr.rel (0) target = $region25
    $region24: #{tpu_custom_call.1} parent=1 // pred_region
      %132 = dma.done [#allocation4], 32
    $region25: #{tpu_custom_call.1} parent=1 // pred_fallthru
      _
    %133 = vsyncpa [#allocation3], 1
    %134 = vsyncpa [#allocation6], 1
    %135 = vsyncpa [#allocation4], 1

</llo_original>
